<compile_context>
chip_gen: v5e
topology: v5e:2x2
jax: 0.10.0
libtpu: 0.0.40
codegen_flags: <defaults>
</compile_context>

<pallas_src>
import functools

import jax
import jax.numpy as jnp
import numpy as np
from jax import lax
from jax.experimental import pallas as pl
from jax.experimental.pallas import tpu as pltpu

# Plain Python floats -> baked as literals, never captured jax arrays.
_BIG = 1e30          # init value of the running per-center min
_MIN_DEPTH = 1e-3    # validity threshold (matches target_points.ge(0.001))
_SENTINEL = 1e4      # finite sentinel for invalid pixels; >> any real depth,
                     # so it never wins a min and never yields inf/NaN.


def _chamfer_kernel(centers_ref, targets_ref, out_ref,
                    minx_ref, sumy_ref, cnt_ref,
                    *, num_bins, p_pad, n_groups):
    """Grid = (N, n_chunks). Batch axis is parallel; chunk axis is the reduction."""
    j = pl.program_id(1)
    n_chunks = pl.num_programs(1)

    @pl.when(j == 0)
    def _init():
        minx_ref[...] = jnp.full(minx_ref.shape, _BIG, dtype=minx_ref.dtype)
        sumy_ref[...] = jnp.zeros(sumy_ref.shape, dtype=sumy_ref.dtype)
        cnt_ref[...] = jnp.zeros(cnt_ref.shape, dtype=cnt_ref.dtype)

    # Bin centers: resident per batch; lane-broadcast hoisted once per grid step.
    c = centers_ref[0]                                    # (p_pad, 1)
    c_b = jnp.broadcast_to(c, (p_pad, 128))               # (p_pad, 128)

    t_view = targets_ref.at[0, 0]                         # (n_groups, 128) ref view

    def group_body(g, carry):
        t_row = t_view[pl.ds(g, 1), :]                    # (1, 128) raw targets
        valid = t_row >= _MIN_DEPTH
        validf = valid.astype(jnp.float32)
        # Mask the 128-lane row ONCE (narrow) with a finite sentinel; the wide
        # per-(center,target) work below is just sub / mul / min.
        t_m = jnp.where(valid, t_row, _SENTINEL)          # (1, 128)

        diff = c_b - t_m                                  # (p_pad, 128)
        d = diff * diff                                   # squared L2 (1-D points)

        # cham_x: running min over targets, updated in place (bounded live range).
        minx_ref[...] = jnp.minimum(minx_ref[...], d)
        # cham_y: nearest-center distance per target, masked lane-partial sums.
        min_y = jnp.min(d, axis=0, keepdims=True)         # (1, 128)
        sumy_ref[...] = sumy_ref[...] + min_y * validf
        cnt_ref[...] = cnt_ref[...] + validf
        return carry

    lax.fori_loop(0, n_groups, group_body, 0, unroll=8)

    @pl.when(j == n_chunks - 1)
    def _finalize():
        # One cross-lane reduce per batch for cham_x.
        min_x = jnp.min(minx_ref[...], axis=1, keepdims=True)      # (p_pad, 1)
        row_ids = lax.broadcasted_iota(jnp.int32, (p_pad, 1), 0)
        real_row = row_ids < num_bins                              # drop padded centers
        cham_x = jnp.sum(jnp.where(real_row, min_x, 0.0)) * (1.0 / num_bins)

        sum_y = jnp.sum(sumy_ref[...])
        count = jnp.sum(cnt_ref[...])
        cham_y = sum_y / jnp.maximum(count, 1.0)
        # Degenerate batch (no valid pixels): both terms -> 0 instead of NaN.
        cham_x = jnp.where(count > 0.0, cham_x, 0.0)

        out_ref[...] = jnp.full(out_ref.shape, cham_x + cham_y, dtype=out_ref.dtype)


def bins_chamfer_loss(bins, target_depth_maps, *, chunk=8192):
    """bins: (N, P+1) f32.  target_depth_maps: NCHW (N, C, H, W) f32."""
    bins = bins.astype(jnp.float32)
    depth = target_depth_maps.astype(jnp.float32)

    n = bins.shape[0]
    centers = 0.5 * (bins[:, 1:] + bins[:, :-1])            # (N, P)
    p = centers.shape[1]
    p_pad = ((p + 7) // 8) * 8
    if p_pad != p:
        # Padding centers duplicate the last real one: they never change the
        # nearest-center min (cham_y) and are masked out of cham_x's sum.
        centers = jnp.pad(centers, ((0, 0), (0, p_pad - p)), mode="edge")
    centers = centers.reshape(n, p_pad, 1)

    flat = depth.reshape(n, -1)
    m = flat.shape[1]
    # Chunk must be a multiple of 1024 (= 8 sublane groups of 128 lanes); clamp
    # it down for tiny inputs so we don't over-pad.
    chunk = max(1024, (chunk // 1024) * 1024)
    m_rounded = ((m + 1023) // 1024) * 1024
    chunk = min(chunk, m_rounded)
    m_pad = ((m + chunk - 1) // chunk) * chunk
    if m_pad != m:
        # Pad with 0.0 (< 1e-3) -> invalid, excluded from both terms.
        flat = jnp.pad(flat, ((0, 0), (0, m_pad - m)), constant_values=0.0)
    n_chunks = m_pad // chunk
    n_groups = chunk // 128
    # Sublane + lane dense streamed layout (no dim-1 second-minor axis).
    targets = flat.reshape(n, n_chunks, n_groups, 128)

    # TODO(synk): for N==1 on v7x, split the chunk axis across the 2 TensorCores
    # (leading parallel axis of size 2 + wrapper combine) to feed both cores.
    per_batch = pl.pallas_call(
        functools.partial(_chamfer_kernel, num_bins=p, p_pad=p_pad,
                          n_groups=n_groups),
        out_shape=jax.ShapeDtypeStruct((n, 8, 128), jnp.float32),
        grid_spec=pltpu.PrefetchScalarGridSpec(
            num_scalar_prefetch=0,
            grid=(n, n_chunks),                              # reduction (chunk) axis last
            in_specs=[
                # Bin centers: resident across the chunk axis.
                pl.BlockSpec((1, p_pad, 1), lambda b, j: (b, 0, 0)),
                # Target pixels: dense streamed chunks, double-buffered by Pallas.
                pl.BlockSpec((1, 1, n_groups, 128), lambda b, j: (b, j, 0, 0)),
            ],
            # Per-batch partial loss, written once at the last chunk (lane-dense tile).
            out_specs=pl.BlockSpec((1, 8, 128), lambda b, j: (b, 0, 0)),
            scratch_shapes=[
                pltpu.VMEM((p_pad, 128), jnp.float32),       # running min_x per center
                pltpu.VMEM((1, 128), jnp.float32),           # running sum_y lane partials
                pltpu.VMEM((1, 128), jnp.float32),           # running valid-pixel count
            ],
        ),
        compiler_params=pltpu.CompilerParams(
            dimension_semantics=("parallel", "arbitrary")),   # batch axis parallel
        cost_estimate=pl.CostEstimate(
            flops=4 * n * p_pad * m_pad,
            transcendentals=0,
            bytes_accessed=4 * (n * m_pad + n * p_pad + n * 8 * 128)),
    )(centers, targets)

    # Per-batch partials -> batch mean in the wrapper (keeps the batch axis parallel).
    return jnp.mean(per_batch[:, 0, 0])


def _reference(bins, target_depth_maps):
    """Pure-JAX reference mirroring the PyTorch/pytorch3d semantics."""
    bins = bins.astype(jnp.float32)
    centers = 0.5 * (bins[:, 1:] + bins[:, :-1])                # (N, P)
    n, p = centers.shape
    t = target_depth_maps.astype(jnp.float32).reshape(n, -1)    # (N, M)
    valid = t >= 0.001
    d = (centers[:, :, None] - t[:, None, :]) ** 2              # (N, P, M)
    cham_x = jnp.min(jnp.where(valid[:, None, :], d, jnp.inf), axis=2).sum(1) / p
    min_y = jnp.min(d, axis=1)                                  # (N, M)
    cham_y = jnp.where(valid, min_y, 0.0).sum(1) / valid.sum(1)
    return jnp.mean(cham_x) + jnp.mean(cham_y)


if __name__ == "__main__":
    key = jax.random.PRNGKey(0)
    k_bins, k_depth = jax.random.split(key)

    N, NBINS_PLUS_1 = 2, 11          # -> 10 bin centers (exercises P padding to 16)
    C, H, W = 1, 24, 32              # NCHW depth maps, M = 768 (-> one 1024-wide chunk)

    bins = jax.random.uniform(k_bins, (N, NBINS_PLUS_1), dtype=jnp.float32,
                              minval=0.1, maxval=10.0)
    # Mix of valid (>= 1e-3) and invalid pixels to exercise the mask.
    target_depth_maps = jax.random.uniform(k_depth, (N, C, H, W), dtype=jnp.float32,
                                           minval=-1.0, maxval=10.0)

    loss = bins_chamfer_loss(bins, target_depth_maps)
    jax.block_until_ready(loss)

    ref = _reference(bins, target_depth_maps)
    np.testing.assert_allclose(np.asarray(loss), np.asarray(ref), rtol=5e-5, atol=1e-5)

    print("KERNEL_OK")
</pallas_src>

<mosaic_0001>
module attributes {stable_mosaic.version = 11 : i64} {
  func.func @_chamfer_kernel(%arg0: i32, %arg1: i32, %arg2: memref<1x16x1xf32, #tpu.memory_space<vmem>>, %arg3: memref<1x1x8x128xf32, #tpu.memory_space<vmem>>, %arg4: memref<1x8x128xf32, #tpu.memory_space<vmem>>, %arg5: memref<16x128xf32, #tpu.memory_space<vmem>>, %arg6: memref<1x128xf32, #tpu.memory_space<vmem>>, %arg7: memref<1x128xf32, #tpu.memory_space<vmem>>) attributes {dimension_semantics = [#tpu.dimension_semantics<parallel>, #tpu.dimension_semantics<arbitrary>], iteration_bounds = array<i64: 2, 1>, scalar_prefetch = 0 : i64, scratch_operands = 3 : i64, tpu.core_type = #tpu.core_type<tc>, window_params = [{transform_indices = @transform_0, window_bounds = array<i64: 1, 16, 1>}, {transform_indices = @transform_1, window_bounds = array<i64: 1, 1, 8, 128>}, {transform_indices = @transform_2, window_bounds = array<i64: 1, 8, 128>}]} {
    %c0_i32 = arith.constant 0 : i32
    %0 = arith.cmpi eq, %arg1, %c0_i32 : i32
    %1 = arith.extui %0 : i1 to i32
    %c0_i32_0 = arith.constant 0 : i32
    %2 = arith.cmpi ne, %1, %c0_i32_0 : i32
    scf.if %2 {
      %cst_151 = arith.constant 1.000000e+30 : f32
      %210 = vector.broadcast %cst_151 : f32 to vector<16x128xf32>
      %c0_152 = arith.constant 0 : index
      %c0_153 = arith.constant 0 : index
      %211 = vector.load %arg5[%c0_152, %c0_153] : memref<16x128xf32, #tpu.memory_space<vmem>>, vector<16x128xf32>
      tpu.vector_store %arg5[%c0_152, %c0_153], %210 {strides = array<i32>} : memref<16x128xf32, #tpu.memory_space<vmem>>, vector<16x128xf32>,
      %cst_154 = arith.constant 0.000000e+00 : f32
      %212 = vector.broadcast %cst_154 : f32 to vector<1x128xf32>
      %c0_155 = arith.constant 0 : index
      %c0_156 = arith.constant 0 : index
      %213 = vector.load %arg6[%c0_155, %c0_156] : memref<1x128xf32, #tpu.memory_space<vmem>>, vector<1x128xf32>
      tpu.vector_store %arg6[%c0_155, %c0_156], %212 {strides = array<i32>} : memref<1x128xf32, #tpu.memory_space<vmem>>, vector<1x128xf32>,
      %cst_157 = arith.constant 0.000000e+00 : f32
      %214 = vector.broadcast %cst_157 : f32 to vector<1x128xf32>
      %c0_158 = arith.constant 0 : index
      %c0_159 = arith.constant 0 : index
      %215 = vector.load %arg7[%c0_158, %c0_159] : memref<1x128xf32, #tpu.memory_space<vmem>>, vector<1x128xf32>
      tpu.vector_store %arg7[%c0_158, %c0_159], %214 {strides = array<i32>} : memref<1x128xf32, #tpu.memory_space<vmem>>, vector<1x128xf32>,
    } else {
    }
    %c0 = arith.constant 0 : index
    %c0_1 = arith.constant 0 : index
    %c0_2 = arith.constant 0 : index
    %3 = vector.load %arg2[%c0, %c0_1, %c0_2] : memref<1x16x1xf32, #tpu.memory_space<vmem>>, vector<1x16x1xf32>
    %4 = vector.shape_cast %3 : vector<1x16x1xf32> to vector<16x1xf32>
    %5 = vector.shape_cast %4 : vector<16x1xf32> to vector<16x1xf32>
    %6 = vector.broadcast %5 : vector<16x1xf32> to vector<16x128xf32>
    %c0_i32_3 = arith.constant 0 : i32
    %c0_i32_4 = arith.constant 0 : i32
    %c0_i32_5 = arith.constant 0 : i32
    %c0_i32_6 = arith.constant 0 : i32
    %c0_i32_7 = arith.constant 0 : i32
    %7 = tpu.memref_slice %arg3[%c0_i32_3, %c0_i32_4, %c0_i32_6, %c0_i32_7] : memref<1x1x8x128xf32, #tpu.memory_space<vmem>> -> memref<1x1x8x128xf32, #tpu.memory_space<vmem>>
    %8 = tpu.memref_squeeze %7 : memref<1x1x8x128xf32, #tpu.memory_space<vmem>> -> memref<8x128xf32, #tpu.memory_space<vmem>>
    %9 = arith.index_cast %c0_i32_5 : i32 to index
    %c0_8 = arith.constant 0 : index
    %10 = vector.load %8[%9, %c0_8] : memref<8x128xf32, #tpu.memory_space<vmem>>, vector<1x128xf32>
    %cst = arith.constant 1.000000e-03 : f32
    %11 = vector.broadcast %cst : f32 to vector<1x128xf32>
    %12 = arith.cmpf oge, %10, %11 : vector<1x128xf32>
    %13 = arith.extui %12 : vector<1x128xi1> to vector<1x128xi32>
    %14 = arith.sitofp %13 : vector<1x128xi32> to vector<1x128xf32>
    %cst_9 = arith.constant 1.000000e+04 : f32
    %15 = vector.broadcast %cst_9 : f32 to vector<1x128xf32>
    %16 = arith.select %12, %10, %15 : vector<1x128xi1>, vector<1x128xf32>
    %17 = vector.broadcast %16 : vector<1x128xf32> to vector<16x128xf32>
    %18 = arith.subf %6, %17 : vector<16x128xf32>
    %19 = arith.mulf %18, %18 : vector<16x128xf32>
    %c0_10 = arith.constant 0 : index
    %c0_11 = arith.constant 0 : index
    %20 = vector.load %arg5[%c0_10, %c0_11] : memref<16x128xf32, #tpu.memory_space<vmem>>, vector<16x128xf32>
    %21 = arith.minimumf %20, %19 : vector<16x128xf32>
    %c0_12 = arith.constant 0 : index
    %c0_13 = arith.constant 0 : index
    %22 = vector.load %arg5[%c0_12, %c0_13] : memref<16x128xf32, #tpu.memory_space<vmem>>, vector<16x128xf32>
    tpu.vector_store %arg5[%c0_12, %c0_13], %21 {strides = array<i32>} : memref<16x128xf32, #tpu.memory_space<vmem>>, vector<16x128xf32>,
    %cst_14 = arith.constant dense<0x7F800000> : vector<128xf32>
    %23 = vector.multi_reduction <minimumf>, %19, %cst_14 [0] : vector<16x128xf32> to vector<128xf32>
    %24 = vector.shape_cast %23 : vector<128xf32> to vector<1x128xf32>
    %c0_15 = arith.constant 0 : index
    %c0_16 = arith.constant 0 : index
    %25 = vector.load %arg6[%c0_15, %c0_16] : memref<1x128xf32, #tpu.memory_space<vmem>>, vector<1x128xf32>
    %26 = arith.mulf %24, %14 : vector<1x128xf32>
    %27 = arith.addf %25, %26 : vector<1x128xf32>
    %c0_17 = arith.constant 0 : index
    %c0_18 = arith.constant 0 : index
    %28 = vector.load %arg6[%c0_17, %c0_18] : memref<1x128xf32, #tpu.memory_space<vmem>>, vector<1x128xf32>
    tpu.vector_store %arg6[%c0_17, %c0_18], %27 {strides = array<i32>} : memref<1x128xf32, #tpu.memory_space<vmem>>, vector<1x128xf32>,
    %c0_19 = arith.constant 0 : index
    %c0_20 = arith.constant 0 : index
    %29 = vector.load %arg7[%c0_19, %c0_20] : memref<1x128xf32, #tpu.memory_space<vmem>>, vector<1x128xf32>
    %30 = arith.addf %29, %14 : vector<1x128xf32>
    %c0_21 = arith.constant 0 : index
    %c0_22 = arith.constant 0 : index
    %31 = vector.load %arg7[%c0_21, %c0_22] : memref<1x128xf32, #tpu.memory_space<vmem>>, vector<1x128xf32>
    tpu.vector_store %arg7[%c0_21, %c0_22], %30 {strides = array<i32>} : memref<1x128xf32, #tpu.memory_space<vmem>>, vector<1x128xf32>,
    %c1_i32 = arith.constant 1 : i32
    %c0_i32_23 = arith.constant 0 : i32
    %c0_i32_24 = arith.constant 0 : i32
    %32 = tpu.memref_slice %arg3[%c0_i32_3, %c0_i32_4, %c0_i32_23, %c0_i32_24] : memref<1x1x8x128xf32, #tpu.memory_space<vmem>> -> memref<1x1x8x128xf32, #tpu.memory_space<vmem>>
    %33 = tpu.memref_squeeze %32 : memref<1x1x8x128xf32, #tpu.memory_space<vmem>> -> memref<8x128xf32, #tpu.memory_space<vmem>>
    %34 = arith.index_cast %c1_i32 : i32 to index
    %c0_25 = arith.constant 0 : index
    %35 = vector.load %33[%34, %c0_25] : memref<8x128xf32, #tpu.memory_space<vmem>>, vector<1x128xf32>
    %cst_26 = arith.constant 1.000000e-03 : f32
    %36 = vector.broadcast %cst_26 : f32 to vector<1x128xf32>
    %37 = arith.cmpf oge, %35, %36 : vector<1x128xf32>
    %38 = arith.extui %37 : vector<1x128xi1> to vector<1x128xi32>
    %39 = arith.sitofp %38 : vector<1x128xi32> to vector<1x128xf32>
    %cst_27 = arith.constant 1.000000e+04 : f32
    %40 = vector.broadcast %cst_27 : f32 to vector<1x128xf32>
    %41 = arith.select %37, %35, %40 : vector<1x128xi1>, vector<1x128xf32>
    %42 = vector.broadcast %41 : vector<1x128xf32> to vector<16x128xf32>
    %43 = arith.subf %6, %42 : vector<16x128xf32>
    %44 = arith.mulf %43, %43 : vector<16x128xf32>
    %c0_28 = arith.constant 0 : index
    %c0_29 = arith.constant 0 : index
    %45 = vector.load %arg5[%c0_28, %c0_29] : memref<16x128xf32, #tpu.memory_space<vmem>>, vector<16x128xf32>
    %46 = arith.minimumf %45, %44 : vector<16x128xf32>
    %c0_30 = arith.constant 0 : index
    %c0_31 = arith.constant 0 : index
    %47 = vector.load %arg5[%c0_30, %c0_31] : memref<16x128xf32, #tpu.memory_space<vmem>>, vector<16x128xf32>
    tpu.vector_store %arg5[%c0_30, %c0_31], %46 {strides = array<i32>} : memref<16x128xf32, #tpu.memory_space<vmem>>, vector<16x128xf32>,
    %cst_32 = arith.constant dense<0x7F800000> : vector<128xf32>
    %48 = vector.multi_reduction <minimumf>, %44, %cst_32 [0] : vector<16x128xf32> to vector<128xf32>
    %49 = vector.shape_cast %48 : vector<128xf32> to vector<1x128xf32>
    %c0_33 = arith.constant 0 : index
    %c0_34 = arith.constant 0 : index
    %50 = vector.load %arg6[%c0_33, %c0_34] : memref<1x128xf32, #tpu.memory_space<vmem>>, vector<1x128xf32>
    %51 = arith.mulf %49, %39 : vector<1x128xf32>
    %52 = arith.addf %50, %51 : vector<1x128xf32>
    %c0_35 = arith.constant 0 : index
    %c0_36 = arith.constant 0 : index
    %53 = vector.load %arg6[%c0_35, %c0_36] : memref<1x128xf32, #tpu.memory_space<vmem>>, vector<1x128xf32>
    tpu.vector_store %arg6[%c0_35, %c0_36], %52 {strides = array<i32>} : memref<1x128xf32, #tpu.memory_space<vmem>>, vector<1x128xf32>,
    %c0_37 = arith.constant 0 : index
    %c0_38 = arith.constant 0 : index
    %54 = vector.load %arg7[%c0_37, %c0_38] : memref<1x128xf32, #tpu.memory_space<vmem>>, vector<1x128xf32>
    %55 = arith.addf %54, %39 : vector<1x128xf32>
    %c0_39 = arith.constant 0 : index
    %c0_40 = arith.constant 0 : index
    %56 = vector.load %arg7[%c0_39, %c0_40] : memref<1x128xf32, #tpu.memory_space<vmem>>, vector<1x128xf32>
    tpu.vector_store %arg7[%c0_39, %c0_40], %55 {strides = array<i32>} : memref<1x128xf32, #tpu.memory_space<vmem>>, vector<1x128xf32>,
    %c2_i32 = arith.constant 2 : i32
    %c0_i32_41 = arith.constant 0 : i32
    %c0_i32_42 = arith.constant 0 : i32
    %57 = tpu.memref_slice %arg3[%c0_i32_3, %c0_i32_4, %c0_i32_41, %c0_i32_42] : memref<1x1x8x128xf32, #tpu.memory_space<vmem>> -> memref<1x1x8x128xf32, #tpu.memory_space<vmem>>
    %58 = tpu.memref_squeeze %57 : memref<1x1x8x128xf32, #tpu.memory_space<vmem>> -> memref<8x128xf32, #tpu.memory_space<vmem>>
    %59 = arith.index_cast %c2_i32 : i32 to index
    %c0_43 = arith.constant 0 : index
    %60 = vector.load %58[%59, %c0_43] : memref<8x128xf32, #tpu.memory_space<vmem>>, vector<1x128xf32>
    %cst_44 = arith.constant 1.000000e-03 : f32
    %61 = vector.broadcast %cst_44 : f32 to vector<1x128xf32>
    %62 = arith.cmpf oge, %60, %61 : vector<1x128xf32>
    %63 = arith.extui %62 : vector<1x128xi1> to vector<1x128xi32>
    %64 = arith.sitofp %63 : vector<1x128xi32> to vector<1x128xf32>
    %cst_45 = arith.constant 1.000000e+04 : f32
    %65 = vector.broadcast %cst_45 : f32 to vector<1x128xf32>
    %66 = arith.select %62, %60, %65 : vector<1x128xi1>, vector<1x128xf32>
    %67 = vector.broadcast %66 : vector<1x128xf32> to vector<16x128xf32>
    %68 = arith.subf %6, %67 : vector<16x128xf32>
    %69 = arith.mulf %68, %68 : vector<16x128xf32>
    %c0_46 = arith.constant 0 : index
    %c0_47 = arith.constant 0 : index
    %70 = vector.load %arg5[%c0_46, %c0_47] : memref<16x128xf32, #tpu.memory_space<vmem>>, vector<16x128xf32>
    %71 = arith.minimumf %70, %69 : vector<16x128xf32>
    %c0_48 = arith.constant 0 : index
    %c0_49 = arith.constant 0 : index
    %72 = vector.load %arg5[%c0_48, %c0_49] : memref<16x128xf32, #tpu.memory_space<vmem>>, vector<16x128xf32>
    tpu.vector_store %arg5[%c0_48, %c0_49], %71 {strides = array<i32>} : memref<16x128xf32, #tpu.memory_space<vmem>>, vector<16x128xf32>,
    %cst_50 = arith.constant dense<0x7F800000> : vector<128xf32>
    %73 = vector.multi_reduction <minimumf>, %69, %cst_50 [0] : vector<16x128xf32> to vector<128xf32>
    %74 = vector.shape_cast %73 : vector<128xf32> to vector<1x128xf32>
    %c0_51 = arith.constant 0 : index
    %c0_52 = arith.constant 0 : index
    %75 = vector.load %arg6[%c0_51, %c0_52] : memref<1x128xf32, #tpu.memory_space<vmem>>, vector<1x128xf32>
    %76 = arith.mulf %74, %64 : vector<1x128xf32>
    %77 = arith.addf %75, %76 : vector<1x128xf32>
    %c0_53 = arith.constant 0 : index
    %c0_54 = arith.constant 0 : index
    %78 = vector.load %arg6[%c0_53, %c0_54] : memref<1x128xf32, #tpu.memory_space<vmem>>, vector<1x128xf32>
    tpu.vector_store %arg6[%c0_53, %c0_54], %77 {strides = array<i32>} : memref<1x128xf32, #tpu.memory_space<vmem>>, vector<1x128xf32>,
    %c0_55 = arith.constant 0 : index
    %c0_56 = arith.constant 0 : index
    %79 = vector.load %arg7[%c0_55, %c0_56] : memref<1x128xf32, #tpu.memory_space<vmem>>, vector<1x128xf32>
    %80 = arith.addf %79, %64 : vector<1x128xf32>
    %c0_57 = arith.constant 0 : index
    %c0_58 = arith.constant 0 : index
    %81 = vector.load %arg7[%c0_57, %c0_58] : memref<1x128xf32, #tpu.memory_space<vmem>>, vector<1x128xf32>
    tpu.vector_store %arg7[%c0_57, %c0_58], %80 {strides = array<i32>} : memref<1x128xf32, #tpu.memory_space<vmem>>, vector<1x128xf32>,
    %c3_i32 = arith.constant 3 : i32
    %c0_i32_59 = arith.constant 0 : i32
    %c0_i32_60 = arith.constant 0 : i32
    %82 = tpu.memref_slice %arg3[%c0_i32_3, %c0_i32_4, %c0_i32_59, %c0_i32_60] : memref<1x1x8x128xf32, #tpu.memory_space<vmem>> -> memref<1x1x8x128xf32, #tpu.memory_space<vmem>>
    %83 = tpu.memref_squeeze %82 : memref<1x1x8x128xf32, #tpu.memory_space<vmem>> -> memref<8x128xf32, #tpu.memory_space<vmem>>
    %84 = arith.index_cast %c3_i32 : i32 to index
    %c0_61 = arith.constant 0 : index
    %85 = vector.load %83[%84, %c0_61] : memref<8x128xf32, #tpu.memory_space<vmem>>, vector<1x128xf32>
    %cst_62 = arith.constant 1.000000e-03 : f32
    %86 = vector.broadcast %cst_62 : f32 to vector<1x128xf32>
    %87 = arith.cmpf oge, %85, %86 : vector<1x128xf32>
    %88 = arith.extui %87 : vector<1x128xi1> to vector<1x128xi32>
    %89 = arith.sitofp %88 : vector<1x128xi32> to vector<1x128xf32>
    %cst_63 = arith.constant 1.000000e+04 : f32
    %90 = vector.broadcast %cst_63 : f32 to vector<1x128xf32>
    %91 = arith.select %87, %85, %90 : vector<1x128xi1>, vector<1x128xf32>
    %92 = vector.broadcast %91 : vector<1x128xf32> to vector<16x128xf32>
    %93 = arith.subf %6, %92 : vector<16x128xf32>
    %94 = arith.mulf %93, %93 : vector<16x128xf32>
    %c0_64 = arith.constant 0 : index
    %c0_65 = arith.constant 0 : index
    %95 = vector.load %arg5[%c0_64, %c0_65] : memref<16x128xf32, #tpu.memory_space<vmem>>, vector<16x128xf32>
    %96 = arith.minimumf %95, %94 : vector<16x128xf32>
    %c0_66 = arith.constant 0 : index
    %c0_67 = arith.constant 0 : index
    %97 = vector.load %arg5[%c0_66, %c0_67] : memref<16x128xf32, #tpu.memory_space<vmem>>, vector<16x128xf32>
    tpu.vector_store %arg5[%c0_66, %c0_67], %96 {strides = array<i32>} : memref<16x128xf32, #tpu.memory_space<vmem>>, vector<16x128xf32>,
    %cst_68 = arith.constant dense<0x7F800000> : vector<128xf32>
    %98 = vector.multi_reduction <minimumf>, %94, %cst_68 [0] : vector<16x128xf32> to vector<128xf32>
    %99 = vector.shape_cast %98 : vector<128xf32> to vector<1x128xf32>
    %c0_69 = arith.constant 0 : index
    %c0_70 = arith.constant 0 : index
    %100 = vector.load %arg6[%c0_69, %c0_70] : memref<1x128xf32, #tpu.memory_space<vmem>>, vector<1x128xf32>
    %101 = arith.mulf %99, %89 : vector<1x128xf32>
    %102 = arith.addf %100, %101 : vector<1x128xf32>
    %c0_71 = arith.constant 0 : index
    %c0_72 = arith.constant 0 : index
    %103 = vector.load %arg6[%c0_71, %c0_72] : memref<1x128xf32, #tpu.memory_space<vmem>>, vector<1x128xf32>
    tpu.vector_store %arg6[%c0_71, %c0_72], %102 {strides = array<i32>} : memref<1x128xf32, #tpu.memory_space<vmem>>, vector<1x128xf32>,
    %c0_73 = arith.constant 0 : index
    %c0_74 = arith.constant 0 : index
    %104 = vector.load %arg7[%c0_73, %c0_74] : memref<1x128xf32, #tpu.memory_space<vmem>>, vector<1x128xf32>
    %105 = arith.addf %104, %89 : vector<1x128xf32>
    %c0_75 = arith.constant 0 : index
    %c0_76 = arith.constant 0 : index
    %106 = vector.load %arg7[%c0_75, %c0_76] : memref<1x128xf32, #tpu.memory_space<vmem>>, vector<1x128xf32>
    tpu.vector_store %arg7[%c0_75, %c0_76], %105 {strides = array<i32>} : memref<1x128xf32, #tpu.memory_space<vmem>>, vector<1x128xf32>,
    %c4_i32 = arith.constant 4 : i32
    %c0_i32_77 = arith.constant 0 : i32
    %c0_i32_78 = arith.constant 0 : i32
    %107 = tpu.memref_slice %arg3[%c0_i32_3, %c0_i32_4, %c0_i32_77, %c0_i32_78] : memref<1x1x8x128xf32, #tpu.memory_space<vmem>> -> memref<1x1x8x128xf32, #tpu.memory_space<vmem>>
    %108 = tpu.memref_squeeze %107 : memref<1x1x8x128xf32, #tpu.memory_space<vmem>> -> memref<8x128xf32, #tpu.memory_space<vmem>>
    %109 = arith.index_cast %c4_i32 : i32 to index
    %c0_79 = arith.constant 0 : index
    %110 = vector.load %108[%109, %c0_79] : memref<8x128xf32, #tpu.memory_space<vmem>>, vector<1x128xf32>
    %cst_80 = arith.constant 1.000000e-03 : f32
    %111 = vector.broadcast %cst_80 : f32 to vector<1x128xf32>
    %112 = arith.cmpf oge, %110, %111 : vector<1x128xf32>
    %113 = arith.extui %112 : vector<1x128xi1> to vector<1x128xi32>
    %114 = arith.sitofp %113 : vector<1x128xi32> to vector<1x128xf32>
    %cst_81 = arith.constant 1.000000e+04 : f32
    %115 = vector.broadcast %cst_81 : f32 to vector<1x128xf32>
    %116 = arith.select %112, %110, %115 : vector<1x128xi1>, vector<1x128xf32>
    %117 = vector.broadcast %116 : vector<1x128xf32> to vector<16x128xf32>
    %118 = arith.subf %6, %117 : vector<16x128xf32>
    %119 = arith.mulf %118, %118 : vector<16x128xf32>
    %c0_82 = arith.constant 0 : index
    %c0_83 = arith.constant 0 : index
    %120 = vector.load %arg5[%c0_82, %c0_83] : memref<16x128xf32, #tpu.memory_space<vmem>>, vector<16x128xf32>
    %121 = arith.minimumf %120, %119 : vector<16x128xf32>
    %c0_84 = arith.constant 0 : index
    %c0_85 = arith.constant 0 : index
    %122 = vector.load %arg5[%c0_84, %c0_85] : memref<16x128xf32, #tpu.memory_space<vmem>>, vector<16x128xf32>
    tpu.vector_store %arg5[%c0_84, %c0_85], %121 {strides = array<i32>} : memref<16x128xf32, #tpu.memory_space<vmem>>, vector<16x128xf32>,
    %cst_86 = arith.constant dense<0x7F800000> : vector<128xf32>
    %123 = vector.multi_reduction <minimumf>, %119, %cst_86 [0] : vector<16x128xf32> to vector<128xf32>
    %124 = vector.shape_cast %123 : vector<128xf32> to vector<1x128xf32>
    %c0_87 = arith.constant 0 : index
    %c0_88 = arith.constant 0 : index
    %125 = vector.load %arg6[%c0_87, %c0_88] : memref<1x128xf32, #tpu.memory_space<vmem>>, vector<1x128xf32>
    %126 = arith.mulf %124, %114 : vector<1x128xf32>
    %127 = arith.addf %125, %126 : vector<1x128xf32>
    %c0_89 = arith.constant 0 : index
    %c0_90 = arith.constant 0 : index
    %128 = vector.load %arg6[%c0_89, %c0_90] : memref<1x128xf32, #tpu.memory_space<vmem>>, vector<1x128xf32>
    tpu.vector_store %arg6[%c0_89, %c0_90], %127 {strides = array<i32>} : memref<1x128xf32, #tpu.memory_space<vmem>>, vector<1x128xf32>,
    %c0_91 = arith.constant 0 : index
    %c0_92 = arith.constant 0 : index
    %129 = vector.load %arg7[%c0_91, %c0_92] : memref<1x128xf32, #tpu.memory_space<vmem>>, vector<1x128xf32>
    %130 = arith.addf %129, %114 : vector<1x128xf32>
    %c0_93 = arith.constant 0 : index
    %c0_94 = arith.constant 0 : index
    %131 = vector.load %arg7[%c0_93, %c0_94] : memref<1x128xf32, #tpu.memory_space<vmem>>, vector<1x128xf32>
    tpu.vector_store %arg7[%c0_93, %c0_94], %130 {strides = array<i32>} : memref<1x128xf32, #tpu.memory_space<vmem>>, vector<1x128xf32>,
    %c5_i32 = arith.constant 5 : i32
    %c0_i32_95 = arith.constant 0 : i32
    %c0_i32_96 = arith.constant 0 : i32
    %132 = tpu.memref_slice %arg3[%c0_i32_3, %c0_i32_4, %c0_i32_95, %c0_i32_96] : memref<1x1x8x128xf32, #tpu.memory_space<vmem>> -> memref<1x1x8x128xf32, #tpu.memory_space<vmem>>
    %133 = tpu.memref_squeeze %132 : memref<1x1x8x128xf32, #tpu.memory_space<vmem>> -> memref<8x128xf32, #tpu.memory_space<vmem>>
    %134 = arith.index_cast %c5_i32 : i32 to index
    %c0_97 = arith.constant 0 : index
    %135 = vector.load %133[%134, %c0_97] : memref<8x128xf32, #tpu.memory_space<vmem>>, vector<1x128xf32>
    %cst_98 = arith.constant 1.000000e-03 : f32
    %136 = vector.broadcast %cst_98 : f32 to vector<1x128xf32>
    %137 = arith.cmpf oge, %135, %136 : vector<1x128xf32>
    %138 = arith.extui %137 : vector<1x128xi1> to vector<1x128xi32>
    %139 = arith.sitofp %138 : vector<1x128xi32> to vector<1x128xf32>
    %cst_99 = arith.constant 1.000000e+04 : f32
    %140 = vector.broadcast %cst_99 : f32 to vector<1x128xf32>
    %141 = arith.select %137, %135, %140 : vector<1x128xi1>, vector<1x128xf32>
    %142 = vector.broadcast %141 : vector<1x128xf32> to vector<16x128xf32>
    %143 = arith.subf %6, %142 : vector<16x128xf32>
    %144 = arith.mulf %143, %143 : vector<16x128xf32>
    %c0_100 = arith.constant 0 : index
    %c0_101 = arith.constant 0 : index
    %145 = vector.load %arg5[%c0_100, %c0_101] : memref<16x128xf32, #tpu.memory_space<vmem>>, vector<16x128xf32>
    %146 = arith.minimumf %145, %144 : vector<16x128xf32>
    %c0_102 = arith.constant 0 : index
    %c0_103 = arith.constant 0 : index
    %147 = vector.load %arg5[%c0_102, %c0_103] : memref<16x128xf32, #tpu.memory_space<vmem>>, vector<16x128xf32>
    tpu.vector_store %arg5[%c0_102, %c0_103], %146 {strides = array<i32>} : memref<16x128xf32, #tpu.memory_space<vmem>>, vector<16x128xf32>,
    %cst_104 = arith.constant dense<0x7F800000> : vector<128xf32>
    %148 = vector.multi_reduction <minimumf>, %144, %cst_104 [0] : vector<16x128xf32> to vector<128xf32>
    %149 = vector.shape_cast %148 : vector<128xf32> to vector<1x128xf32>
    %c0_105 = arith.constant 0 : index
    %c0_106 = arith.constant 0 : index
    %150 = vector.load %arg6[%c0_105, %c0_106] : memref<1x128xf32, #tpu.memory_space<vmem>>, vector<1x128xf32>
    %151 = arith.mulf %149, %139 : vector<1x128xf32>
    %152 = arith.addf %150, %151 : vector<1x128xf32>
    %c0_107 = arith.constant 0 : index
    %c0_108 = arith.constant 0 : index
    %153 = vector.load %arg6[%c0_107, %c0_108] : memref<1x128xf32, #tpu.memory_space<vmem>>, vector<1x128xf32>
    tpu.vector_store %arg6[%c0_107, %c0_108], %152 {strides = array<i32>} : memref<1x128xf32, #tpu.memory_space<vmem>>, vector<1x128xf32>,
    %c0_109 = arith.constant 0 : index
    %c0_110 = arith.constant 0 : index
    %154 = vector.load %arg7[%c0_109, %c0_110] : memref<1x128xf32, #tpu.memory_space<vmem>>, vector<1x128xf32>
    %155 = arith.addf %154, %139 : vector<1x128xf32>
    %c0_111 = arith.constant 0 : index
    %c0_112 = arith.constant 0 : index
    %156 = vector.load %arg7[%c0_111, %c0_112] : memref<1x128xf32, #tpu.memory_space<vmem>>, vector<1x128xf32>
    tpu.vector_store %arg7[%c0_111, %c0_112], %155 {strides = array<i32>} : memref<1x128xf32, #tpu.memory_space<vmem>>, vector<1x128xf32>,
    %c6_i32 = arith.constant 6 : i32
    %c0_i32_113 = arith.constant 0 : i32
    %c0_i32_114 = arith.constant 0 : i32
    %157 = tpu.memref_slice %arg3[%c0_i32_3, %c0_i32_4, %c0_i32_113, %c0_i32_114] : memref<1x1x8x128xf32, #tpu.memory_space<vmem>> -> memref<1x1x8x128xf32, #tpu.memory_space<vmem>>
    %158 = tpu.memref_squeeze %157 : memref<1x1x8x128xf32, #tpu.memory_space<vmem>> -> memref<8x128xf32, #tpu.memory_space<vmem>>
    %159 = arith.index_cast %c6_i32 : i32 to index
    %c0_115 = arith.constant 0 : index
    %160 = vector.load %158[%159, %c0_115] : memref<8x128xf32, #tpu.memory_space<vmem>>, vector<1x128xf32>
    %cst_116 = arith.constant 1.000000e-03 : f32
    %161 = vector.broadcast %cst_116 : f32 to vector<1x128xf32>
    %162 = arith.cmpf oge, %160, %161 : vector<1x128xf32>
    %163 = arith.extui %162 : vector<1x128xi1> to vector<1x128xi32>
    %164 = arith.sitofp %163 : vector<1x128xi32> to vector<1x128xf32>
    %cst_117 = arith.constant 1.000000e+04 : f32
    %165 = vector.broadcast %cst_117 : f32 to vector<1x128xf32>
    %166 = arith.select %162, %160, %165 : vector<1x128xi1>, vector<1x128xf32>
    %167 = vector.broadcast %166 : vector<1x128xf32> to vector<16x128xf32>
    %168 = arith.subf %6, %167 : vector<16x128xf32>
    %169 = arith.mulf %168, %168 : vector<16x128xf32>
    %c0_118 = arith.constant 0 : index
    %c0_119 = arith.constant 0 : index
    %170 = vector.load %arg5[%c0_118, %c0_119] : memref<16x128xf32, #tpu.memory_space<vmem>>, vector<16x128xf32>
    %171 = arith.minimumf %170, %169 : vector<16x128xf32>
    %c0_120 = arith.constant 0 : index
    %c0_121 = arith.constant 0 : index
    %172 = vector.load %arg5[%c0_120, %c0_121] : memref<16x128xf32, #tpu.memory_space<vmem>>, vector<16x128xf32>
    tpu.vector_store %arg5[%c0_120, %c0_121], %171 {strides = array<i32>} : memref<16x128xf32, #tpu.memory_space<vmem>>, vector<16x128xf32>,
    %cst_122 = arith.constant dense<0x7F800000> : vector<128xf32>
    %173 = vector.multi_reduction <minimumf>, %169, %cst_122 [0] : vector<16x128xf32> to vector<128xf32>
    %174 = vector.shape_cast %173 : vector<128xf32> to vector<1x128xf32>
    %c0_123 = arith.constant 0 : index
    %c0_124 = arith.constant 0 : index
    %175 = vector.load %arg6[%c0_123, %c0_124] : memref<1x128xf32, #tpu.memory_space<vmem>>, vector<1x128xf32>
    %176 = arith.mulf %174, %164 : vector<1x128xf32>
    %177 = arith.addf %175, %176 : vector<1x128xf32>
    %c0_125 = arith.constant 0 : index
    %c0_126 = arith.constant 0 : index
    %178 = vector.load %arg6[%c0_125, %c0_126] : memref<1x128xf32, #tpu.memory_space<vmem>>, vector<1x128xf32>
    tpu.vector_store %arg6[%c0_125, %c0_126], %177 {strides = array<i32>} : memref<1x128xf32, #tpu.memory_space<vmem>>, vector<1x128xf32>,
    %c0_127 = arith.constant 0 : index
    %c0_128 = arith.constant 0 : index
    %179 = vector.load %arg7[%c0_127, %c0_128] : memref<1x128xf32, #tpu.memory_space<vmem>>, vector<1x128xf32>
    %180 = arith.addf %179, %164 : vector<1x128xf32>
    %c0_129 = arith.constant 0 : index
    %c0_130 = arith.constant 0 : index
    %181 = vector.load %arg7[%c0_129, %c0_130] : memref<1x128xf32, #tpu.memory_space<vmem>>, vector<1x128xf32>
    tpu.vector_store %arg7[%c0_129, %c0_130], %180 {strides = array<i32>} : memref<1x128xf32, #tpu.memory_space<vmem>>, vector<1x128xf32>,
    %c7_i32 = arith.constant 7 : i32
    %c0_i32_131 = arith.constant 0 : i32
    %c0_i32_132 = arith.constant 0 : i32
    %182 = tpu.memref_slice %arg3[%c0_i32_3, %c0_i32_4, %c0_i32_131, %c0_i32_132] : memref<1x1x8x128xf32, #tpu.memory_space<vmem>> -> memref<1x1x8x128xf32, #tpu.memory_space<vmem>>
    %183 = tpu.memref_squeeze %182 : memref<1x1x8x128xf32, #tpu.memory_space<vmem>> -> memref<8x128xf32, #tpu.memory_space<vmem>>
    %184 = arith.index_cast %c7_i32 : i32 to index
    %c0_133 = arith.constant 0 : index
    %185 = vector.load %183[%184, %c0_133] : memref<8x128xf32, #tpu.memory_space<vmem>>, vector<1x128xf32>
    %cst_134 = arith.constant 1.000000e-03 : f32
    %186 = vector.broadcast %cst_134 : f32 to vector<1x128xf32>
    %187 = arith.cmpf oge, %185, %186 : vector<1x128xf32>
    %188 = arith.extui %187 : vector<1x128xi1> to vector<1x128xi32>
    %189 = arith.sitofp %188 : vector<1x128xi32> to vector<1x128xf32>
    %cst_135 = arith.constant 1.000000e+04 : f32
    %190 = vector.broadcast %cst_135 : f32 to vector<1x128xf32>
    %191 = arith.select %187, %185, %190 : vector<1x128xi1>, vector<1x128xf32>
    %192 = vector.broadcast %191 : vector<1x128xf32> to vector<16x128xf32>
    %193 = arith.subf %6, %192 : vector<16x128xf32>
    %194 = arith.mulf %193, %193 : vector<16x128xf32>
    %c0_136 = arith.constant 0 : index
    %c0_137 = arith.constant 0 : index
    %195 = vector.load %arg5[%c0_136, %c0_137] : memref<16x128xf32, #tpu.memory_space<vmem>>, vector<16x128xf32>
    %196 = arith.minimumf %195, %194 : vector<16x128xf32>
    %c0_138 = arith.constant 0 : index
    %c0_139 = arith.constant 0 : index
    %197 = vector.load %arg5[%c0_138, %c0_139] : memref<16x128xf32, #tpu.memory_space<vmem>>, vector<16x128xf32>
    tpu.vector_store %arg5[%c0_138, %c0_139], %196 {strides = array<i32>} : memref<16x128xf32, #tpu.memory_space<vmem>>, vector<16x128xf32>,
    %cst_140 = arith.constant dense<0x7F800000> : vector<128xf32>
    %198 = vector.multi_reduction <minimumf>, %194, %cst_140 [0] : vector<16x128xf32> to vector<128xf32>
    %199 = vector.shape_cast %198 : vector<128xf32> to vector<1x128xf32>
    %c0_141 = arith.constant 0 : index
    %c0_142 = arith.constant 0 : index
    %200 = vector.load %arg6[%c0_141, %c0_142] : memref<1x128xf32, #tpu.memory_space<vmem>>, vector<1x128xf32>
    %201 = arith.mulf %199, %189 : vector<1x128xf32>
    %202 = arith.addf %200, %201 : vector<1x128xf32>
    %c0_143 = arith.constant 0 : index
    %c0_144 = arith.constant 0 : index
    %203 = vector.load %arg6[%c0_143, %c0_144] : memref<1x128xf32, #tpu.memory_space<vmem>>, vector<1x128xf32>
    tpu.vector_store %arg6[%c0_143, %c0_144], %202 {strides = array<i32>} : memref<1x128xf32, #tpu.memory_space<vmem>>, vector<1x128xf32>,
    %c0_145 = arith.constant 0 : index
    %c0_146 = arith.constant 0 : index
    %204 = vector.load %arg7[%c0_145, %c0_146] : memref<1x128xf32, #tpu.memory_space<vmem>>, vector<1x128xf32>
    %205 = arith.addf %204, %189 : vector<1x128xf32>
    %c0_147 = arith.constant 0 : index
    %c0_148 = arith.constant 0 : index
    %206 = vector.load %arg7[%c0_147, %c0_148] : memref<1x128xf32, #tpu.memory_space<vmem>>, vector<1x128xf32>
    tpu.vector_store %arg7[%c0_147, %c0_148], %205 {strides = array<i32>} : memref<1x128xf32, #tpu.memory_space<vmem>>, vector<1x128xf32>,
    %c8_i32 = arith.constant 8 : i32
    %c0_i32_149 = arith.constant 0 : i32
    %207 = arith.cmpi eq, %arg1, %c0_i32_149 : i32
    %208 = arith.extui %207 : i1 to i32
    %c0_i32_150 = arith.constant 0 : i32
    %209 = arith.cmpi ne, %208, %c0_i32_150 : i32
    scf.if %209 {
      %c0_151 = arith.constant 0 : index
      %c0_152 = arith.constant 0 : index
      %210 = vector.load %arg5[%c0_151, %c0_152] : memref<16x128xf32, #tpu.memory_space<vmem>>, vector<16x128xf32>
      %cst_153 = arith.constant dense<0x7F800000> : vector<16xf32>
      %211 = vector.multi_reduction <minimumf>, %210, %cst_153 [1] : vector<16x128xf32> to vector<16xf32>
      %212 = vector.shape_cast %211 : vector<16xf32> to vector<16x1xf32>
      %213 = tpu.iota {dimensions = array<i32: 0>} : vector<16x1xi32>
      %c10_i32 = arith.constant 10 : i32
      %214 = vector.broadcast %c10_i32 : i32 to vector<16x1xi32>
      %215 = arith.cmpi slt, %213, %214 : vector<16x1xi32>
      %cst_154 = arith.constant 0.000000e+00 : f32
      %216 = vector.broadcast %cst_154 : f32 to vector<16x1xf32>
      %217 = arith.select %215, %212, %216 : vector<16x1xi1>, vector<16x1xf32>
      %218 = vector.shape_cast %217 : vector<16x1xf32> to vector<1x16x1xf32>
      %cst_155 = arith.constant dense<0.000000e+00> : vector<1xf32>
      %219 = vector.multi_reduction <add>, %218, %cst_155 [1, 2] : vector<1x16x1xf32> to vector<1xf32>
      %220 = vector.shape_cast %219 : vector<1xf32> to vector<1x1x1xf32>
      %221 = vector.extract %220[0, 0, 0] : f32 from vector<1x1x1xf32>
      %cst_156 = arith.constant 1.000000e-01 : f32
      %222 = arith.mulf %221, %cst_156 : f32
      %c0_157 = arith.constant 0 : index
      %c0_158 = arith.constant 0 : index
      %223 = vector.load %arg6[%c0_157, %c0_158] : memref<1x128xf32, #tpu.memory_space<vmem>>, vector<1x128xf32>
      %224 = vector.shape_cast %223 : vector<1x128xf32> to vector<1x1x128xf32>
      %cst_159 = arith.constant dense<0.000000e+00> : vector<1xf32>
      %225 = vector.multi_reduction <add>, %224, %cst_159 [1, 2] : vector<1x1x128xf32> to vector<1xf32>
      %226 = vector.shape_cast %225 : vector<1xf32> to vector<1x1x1xf32>
      %227 = vector.extract %226[0, 0, 0] : f32 from vector<1x1x1xf32>
      %c0_160 = arith.constant 0 : index
      %c0_161 = arith.constant 0 : index
      %228 = vector.load %arg7[%c0_160, %c0_161] : memref<1x128xf32, #tpu.memory_space<vmem>>, vector<1x128xf32>
      %229 = vector.shape_cast %228 : vector<1x128xf32> to vector<1x1x128xf32>
      %cst_162 = arith.constant dense<0.000000e+00> : vector<1xf32>
      %230 = vector.multi_reduction <add>, %229, %cst_162 [1, 2] : vector<1x1x128xf32> to vector<1xf32>
      %231 = vector.shape_cast %230 : vector<1xf32> to vector<1x1x1xf32>
      %232 = vector.extract %231[0, 0, 0] : f32 from vector<1x1x1xf32>
      %cst_163 = arith.constant 1.000000e+00 : f32
      %233 = arith.maximumf %232, %cst_163 : f32
      %234 = arith.divf %227, %233 : f32
      %cst_164 = arith.constant 0.000000e+00 : f32
      %235 = arith.cmpf ogt, %232, %cst_164 : f32
      %cst_165 = arith.constant 0.000000e+00 : f32
      %236 = arith.select %235, %222, %cst_165 : f32
      %237 = arith.addf %236, %234 : f32
      %238 = vector.broadcast %237 : f32 to vector<1x8x128xf32>
      %c0_166 = arith.constant 0 : index
      %c0_167 = arith.constant 0 : index
      %c0_168 = arith.constant 0 : index
      %239 = vector.load %arg4[%c0_166, %c0_167, %c0_168] : memref<1x8x128xf32, #tpu.memory_space<vmem>>, vector<1x8x128xf32>
      tpu.vector_store %arg4[%c0_166, %c0_167, %c0_168], %238 {strides = array<i32>} : memref<1x8x128xf32, #tpu.memory_space<vmem>>, vector<1x8x128xf32>,
    } else {
    }
    return
  }
  func.func @transform_0(%arg0: i32, %arg1: i32) -> (i32, i32, i32) {
    %c0_i32 = arith.constant 0 : i32
    %c0_i32_0 = arith.constant 0 : i32
    %c0_i32_1 = arith.constant 0 : i32
    return %arg0, %c0_i32, %c0_i32_0 : i32, i32, i32
  }
  func.func @transform_1(%arg0: i32, %arg1: i32) -> (i32, i32, i32, i32) {
    %c0_i32 = arith.constant 0 : i32
    %c0_i32_0 = arith.constant 0 : i32
    %c0_i32_1 = arith.constant 0 : i32
    return %arg0, %arg1, %c0_i32, %c0_i32_0 : i32, i32, i32, i32
  }
  func.func @transform_2(%arg0: i32, %arg1: i32) -> (i32, i32, i32) {
    %c0_i32 = arith.constant 0 : i32
    %c0_i32_0 = arith.constant 0 : i32
    %c0_i32_1 = arith.constant 0 : i32
    return %arg0, %c0_i32, %c0_i32_0 : i32, i32, i32
  }
}

</mosaic_0001>

<llo_original>
// kernel: tpu_custom_call.1
$region0: #{tpu_custom_call.1}
  #allocation0 [shape = 'u32[]', space=smem, size = 0x4, offset = 0x4, fixed_abs, tag = 'smem constant byte address 0x4 - core index']
  #allocation1 [shape = 'u32[72,128]{1,0:T(1,128)}', space=vmem, size = 0x9000, scoped, tag = 'internal scratch']
  #allocation2 [shape = 'f32[16,128]{1,0:T(8,128)}', space=vmem, size = 0x2000, scoped, tag = 'scratch operand']
  #allocation3 [shape = 'f32[1,128]{1,0:T(1,128)}', space=vmem, size = 0x200, scoped, tag = 'scratch operand']
  #allocation4 [shape = 'f32[1,128]{1,0:T(1,128)}', space=vmem, size = 0x200, scoped, tag = 'scratch operand']
  %s0 = inlined_call_operand.vmem [shape: f32[2,16,1], index: 0, kind: input, shape index: {}]
  %s1 = inlined_call_operand.vmem [shape: f32[2,1,8,128], index: 1, kind: input, shape index: {}]
  %s2 = inlined_call_operand.hbm [shape: f32[2,8,128], index: 2, kind: output, shape index: {}]
  %s3 = sld [smem:[#allocation0]]
  $region49: #{tpu_custom_call.1} parent=0
    _
  %s5 = ssub.s32 1, %s3
  %s6 = scalar_select 0, %s5, %s3
  $region1: #{tpu_custom_call.1} parent=0
    #allocation5 [shape = 'u8[8192]{0}', space=vmem, size = 0x2000, scoped, tag = 'output window, operand 0']
    #allocation6 [shape = 's32[2]{0}', space=sflag, size = 0x8, scoped, tag = 'scoped memory for tpu_custom_call.1']
    %7 = vsyncpa [#allocation6], 0
    %s8 = scalar_lea.sflag [#allocation6], 1
    %9 = vsyncpa %s8, 0
    loop: start=0, step=1, limit=4
    $region2: #{tpu_custom_call.1} parent=1 // loop_pre_header
      _
    $region3: #{tpu_custom_call.1} parent=1 // loop_header
      %s11 = sphi 0, %s15
      %p12 = scmp.ge.s32.totalorder %s11, 4
      %s18 = sphi 0, %s30
      %s19 = sphi 0, %s26
      %s20 = sphi 0, %s18
      %s21 = sphi 0, %s19
      %s22 = sphi 0, %s20
      %s23 = sphi 0, %s21
      %s33 = sphi 0, %s35
      %s36 = sphi 0, %s33
      %s37 = sphi 0, %s36
      %s53 = sphi 0, %s37
      %s61 = sphi 0, %s63
      %s64 = sphi 0, %s61
      %s65 = sphi 0, %s64
      %s81 = sphi 0, %s65
      %s87 = sphi 0, %s89
      %s90 = sphi 0, %s87
      %s91 = sphi 0, %s90
      %s107 = sphi 0, %s91
    $region4: #{tpu_custom_call.1} parent=1 // loop_header_branch
      %14 = sbr.rel (%p12) target = $region8
    $region5: #{tpu_custom_call.1} parent=1 // loop_body
      %s16 = ssub.s32 %s11, 1
      %s17 = ssub.s32 %s11, 2
      %s24 = sadd.s32 1, %s19
      %p25 = scmp.ge.s32.totalorder %s24, 1
      %s26 = scalar_select %p25, 0, %s24
      %s27 = sadd.s32 1, %s18
      %s28 = scalar_select %p25, %s27, %s18
      %p29 = scmp.ge.s32.totalorder %s28, 2
      %s30 = scalar_select %p29, 0, %s28
      %s31 = ssub.s32 %s18, %s30
      %p32 = scmp.eq.s32.totalorder %s31, 0
      %s34 = sadd.s32 %s33, 1
      %s35 = scalar_select %p32, %s33, %s34
      %p38 = pneg %p32
      %p39 = scmp.eq.s32.totalorder %s11, 1
      %p40 = por %p38, %p39
      %p41 = scmp.ne.s32.totalorder %s33, %s36
      %p42 = scmp.eq.s32.totalorder %s11, 0
      %p43 = por %p41, %p42
      %p44 = scmp.ne.s32.totalorder %s33, %s36
      %p45 = scmp.eq.s32.totalorder %s16, 1
      %p46 = por %p44, %p45
      %p47 = scmp.ne.s32.totalorder %s36, %s37
      %p48 = scmp.eq.s32.totalorder %s16, 0
      %p49 = por %p47, %p48
      %p50 = scmp.ne.s32.totalorder %s36, %s37
      %p51 = scmp.eq.s32.totalorder %s17, 1
      %p52 = por %p50, %p51
      %p54 = scmp.ne.s32.totalorder %s37, %s53
      %p55 = scmp.eq.s32.totalorder %s17, 0
      %p56 = por %p54, %p55
      %s57 = ssub.s32 %s18, %s30
      %s58 = ssub.s32 %s19, %s26
      %s59 = sor.u32 %s57, %s58
      %p60 = scmp.eq.s32.totalorder %s59, 0
      %s62 = sadd.s32 %s61, 1
      %s63 = scalar_select %p60, %s61, %s62
      %p66 = pneg %p60
      %p67 = scmp.eq.s32.totalorder %s11, 1
      %p68 = por %p66, %p67
      %p69 = scmp.ne.s32.totalorder %s61, %s64
      %p70 = scmp.eq.s32.totalorder %s11, 0
      %p71 = por %p69, %p70
      %p72 = scmp.ne.s32.totalorder %s61, %s64
      %p73 = scmp.eq.s32.totalorder %s16, 1
      %p74 = por %p72, %p73
      %p75 = scmp.ne.s32.totalorder %s64, %s65
      %p76 = scmp.eq.s32.totalorder %s16, 0
      %p77 = por %p75, %p76
      %p78 = scmp.ne.s32.totalorder %s64, %s65
      %p79 = scmp.eq.s32.totalorder %s17, 1
      %p80 = por %p78, %p79
      %p82 = scmp.ne.s32.totalorder %s65, %s81
      %p83 = scmp.eq.s32.totalorder %s17, 0
      %p84 = por %p82, %p83
      %s85 = ssub.s32 %s18, %s30
      %p86 = scmp.eq.s32.totalorder %s85, 0
      %s88 = sadd.s32 %s87, 1
      %s89 = scalar_select %p86, %s87, %s88
      %p92 = pneg %p86
      %p93 = scmp.eq.s32.totalorder %s11, 1
      %p94 = por %p92, %p93
      %p95 = scmp.ne.s32.totalorder %s87, %s90
      %p96 = scmp.eq.s32.totalorder %s11, 0
      %p97 = por %p95, %p96
      %p98 = scmp.ne.s32.totalorder %s87, %s90
      %p99 = scmp.eq.s32.totalorder %s16, 1
      %p100 = por %p98, %p99
      %p101 = scmp.ne.s32.totalorder %s90, %s91
      %p102 = scmp.eq.s32.totalorder %s16, 0
      %p103 = por %p101, %p102
      %p104 = scmp.ne.s32.totalorder %s90, %s91
      %p105 = scmp.eq.s32.totalorder %s17, 1
      %p106 = por %p104, %p105
      %p108 = scmp.ne.s32.totalorder %s91, %s107
      %p109 = scmp.eq.s32.totalorder %s17, 0
      %p110 = por %p108, %p109
      %p111 = scmp.le.s32.totalorder 1, %s11
      %p112 = scmp.lt.s32.totalorder %s11, 3
      %p113 = pnand %p111, %p112
      %p114 = pneg %p113
      // Predicated region
      $region9: #{tpu_custom_call.1} parent=5 // pred_check
        _
      $region10: #{tpu_custom_call.1} parent=5 // pred_check_branch
        %116 = sbr.rel (%p113) target = $region12
      $region11: #{tpu_custom_call.1} parent=5 // pred_region
        %s117 = ssub.s32 %s11, 1
      $region12: #{tpu_custom_call.1} parent=5 // pred_fallthru
        _
      %p118 = scmp.lt.s32.totalorder %s11, 2
      // Predicated region
      $region13: #{tpu_custom_call.1} parent=5 // pred_check
        %p119 = pneg %p118
      $region14: #{tpu_custom_call.1} parent=5 // pred_check_branch
        %121 = sbr.rel (%p119) target = $region16
      $region15: #{tpu_custom_call.1} parent=5 // pred_region
        // Predicated region
        $region17: #{tpu_custom_call.1} parent=15 // pred_check
          %p122 = pneg %p43
        $region18: #{tpu_custom_call.1} parent=15 // pred_check_branch
          %124 = sbr.rel (%p122) target = $region20
        $region19: #{tpu_custom_call.1} parent=15 // pred_region
          %p125 = scmp.lt.s32.totalorder %s18, 1
          %s126 = scalar_select %p125, %s18, 1
          %s127 = smul.addr %s126, 2
          %s128 = smul.addr %s127, 8
          %s129 = scalar_lea.vmem %s0, %s128
        $region20: #{tpu_custom_call.1} parent=15 // pred_fallthru
          _
        // Predicated region
        $region21: #{tpu_custom_call.1} parent=15 // pred_check
          %p130 = pneg %p71
        $region22: #{tpu_custom_call.1} parent=15 // pred_check_branch
          %132 = sbr.rel (%p130) target = $region24
        $region23: #{tpu_custom_call.1} parent=15 // pred_region
          %p133 = scmp.lt.s32.totalorder %s18, 1
          %s134 = scalar_select %p133, %s18, 1
          %p135 = scmp.lt.s32.totalorder %s19, 0
          %s136 = scalar_select %p135, %s19, 0
          %s137 = sadd.s32 %s136, %s134
          %s138 = smul.addr %s137, 8
          %s139 = scalar_lea.vmem %s1, %s138
        $region24: #{tpu_custom_call.1} parent=15 // pred_fallthru
          _
      $region16: #{tpu_custom_call.1} parent=5 // pred_fallthru
        _
      %p140 = scmp.le.s32.totalorder 1, %s11
      %p141 = scmp.lt.s32.totalorder %s11, 3
      %p142 = pnand %p140, %p141
      %p143 = pneg %p142
      // Predicated region
      $region25: #{tpu_custom_call.1} parent=5 // pred_check
        _
      $region26: #{tpu_custom_call.1} parent=5 // pred_check_branch
        %145 = sbr.rel (%p142) target = $region28
      $region27: #{tpu_custom_call.1} parent=5 // pred_region
        %s146 = ssub.s32 %s11, 1
        %p147 = scmp.lt.s32.totalorder %s20, 1
        %s148 = scalar_select %p147, %s20, 1
        %s149 = smul.addr %s148, 2
        %s150 = smul.addr %s149, 8
        %s151 = scalar_lea.vmem %s0, %s150
        %p152 = pneg %p49
        %p153 = pneg %p46
        %p154 = scmp.lt.s32.totalorder %s20, 1
        %s155 = scalar_select %p154, %s20, 1
        %p156 = scmp.lt.s32.totalorder %s21, 0
        %s157 = scalar_select %p156, %s21, 0
        %s158 = sadd.s32 %s157, %s155
        %s159 = smul.addr %s158, 8
        %s160 = scalar_lea.vmem %s1, %s159
        %p161 = pneg %p77
        %p162 = pneg %p74
        %p163 = pneg %p103
        %p164 = pneg %p100
        %s165 = sand.u32 %s90, 1
        %s166 = scalar_lea.sflag [#allocation6], %s165
        %s167 = sand.u32 %s90, 1
        %s168 = smul.addr %s167, 8
        %s169 = scalar_lea.vmem [#allocation5], %s168
        %p170 = scmp.lt.s32.totalorder %s20, 1
        %s171 = scalar_select %p170, %s20, 1
        %s172 = smul.addr %s171, 2
        %s173 = smul.addr %s172, 8
        %s174 = scalar_lea.vmem %s0, %s173
        %p175 = scmp.lt.s32.totalorder %s20, 1
        %s176 = scalar_select %p175, %s20, 1
        %p177 = scmp.lt.s32.totalorder %s21, 0
        %s178 = scalar_select %p177, %s21, 0
        %s179 = sadd.s32 %s178, %s176
        %s180 = smul.addr %s179, 8
        %s181 = scalar_lea.vmem %s1, %s180
        %p182 = scmp.eq.s32.totalorder %s21, 0
        // Predicated region
        $region29: #{tpu_custom_call.1} parent=27 // pred_check
          %p183 = pneg %p182
        $region30: #{tpu_custom_call.1} parent=27 // pred_check_branch
          %185 = sbr.rel (%p183) target = $region32
        $region31: #{tpu_custom_call.1} parent=27 // pred_region
          %186 = vst [vmem:[#allocation2] sm:$0xff] 1e+30
          %187 = vst [vmem:[#allocation2 + $0x8] sm:$0xff] 1e+30
          %188 = vst [vmem:[#allocation3] sm:$0x1] 0.0
          %189 = vst [vmem:[#allocation4] sm:$0x1] 0.0
        $region32: #{tpu_custom_call.1} parent=27 // pred_fallthru
          _
        %v190 = vld [vmem:[%s174] sm:$0xff]
        %v191 = vld [vmem:[%s174 + $0x8] sm:$0xff]
        %193 = vset.pattern.permute.xlu0 0
        %194 = vperm.xlu0 %193, %v190
        %v195 = vpop.permute.xlu0 %194
        %198 = vset.pattern.permute.xlu0 0
        %199 = vperm.xlu0 %198, %v191
        %v200 = vpop.permute.xlu0 %199
        %v202 = vld [vmem:[%s181] sm:$0x1]
        %vm203 = vcmp.ge.f32.partialorder %v202, 0.001
        %v204 = vsel %vm203, 1, 0
        %v205 = vcvt.s32.f32 %v204
        %v206 = vsel %vm203, %v202, 10000.0
        %v207 = vperm.slane %v206, 0
        %v208 = vsub.f32 %v195, %v207
        %v209 = vsub.f32 %v200, %v207
        %v210 = vmul.f32 %v208, %v208
        %v211 = vmul.f32 %v209, %v209
        %v212 = vld [vmem:[#allocation2] sm:$0xff]
        %v213 = vld [vmem:[#allocation2 + $0x8] sm:$0xff]
        %v214 = vmin.f32 %v212, %v210
        %v215 = vmin.f32 %v213, %v211
        %216 = vst [vmem:[#allocation2] sm:$0xff] %v214
        %217 = vst [vmem:[#allocation2 + $0x8] sm:$0xff] %v215
        %v218 = vmin.f32 %v210, %v211
        %v219 = vrot.slane %v218, 4
        %v220 = vmin.f32 %v218, %v219
        %v221 = vrot.slane %v220, 2
        %v222 = vmin.f32 %v220, %v221
        %v223 = vrot.slane %v222, 1
        %v224 = vmin.f32 %v222, %v223
        %v225 = vld [vmem:[#allocation3] sm:$0x1]
        %v226 = vmul.f32 %v224, %v205
        %v227 = vadd.f32 %v225, %v226
        %228 = vst [vmem:[#allocation3] sm:$0x1] %v227
        %v229 = vld [vmem:[#allocation4] sm:$0x1]
        %v230 = vadd.f32 %v229, %v205
        %231 = vst [vmem:[#allocation4] sm:$0x1] %v230
        %v232 = vld [vmem:[%s181 + $0x1] sm:$0x1]
        %vm233 = vcmp.ge.f32.partialorder %v232, 0.001
        %v234 = vsel %vm233, 1, 0
        %v235 = vcvt.s32.f32 %v234
        %v236 = vsel %vm233, %v232, 10000.0
        %v237 = vperm.slane %v236, 0
        %v238 = vsub.f32 %v195, %v237
        %v239 = vsub.f32 %v200, %v237
        %v240 = vmul.f32 %v238, %v238
        %v241 = vmul.f32 %v239, %v239
        %v242 = vld [vmem:[#allocation2] sm:$0xff]
        %v243 = vld [vmem:[#allocation2 + $0x8] sm:$0xff]
        %v244 = vmin.f32 %v242, %v240
        %v245 = vmin.f32 %v243, %v241
        %246 = vst [vmem:[#allocation2] sm:$0xff] %v244
        %247 = vst [vmem:[#allocation2 + $0x8] sm:$0xff] %v245
        %v248 = vmin.f32 %v240, %v241
        %v249 = vrot.slane %v248, 4
        %v250 = vmin.f32 %v248, %v249
        %v251 = vrot.slane %v250, 2
        %v252 = vmin.f32 %v250, %v251
        %v253 = vrot.slane %v252, 1
        %v254 = vmin.f32 %v252, %v253
        %v255 = vld [vmem:[#allocation3] sm:$0x1]
        %v256 = vmul.f32 %v254, %v235
        %v257 = vadd.f32 %v255, %v256
        %258 = vst [vmem:[#allocation3] sm:$0x1] %v257
        %v259 = vld [vmem:[#allocation4] sm:$0x1]
        %v260 = vadd.f32 %v259, %v235
        %261 = vst [vmem:[#allocation4] sm:$0x1] %v260
        %v262 = vld [vmem:[%s181 + $0x2] sm:$0x1]
        %vm263 = vcmp.ge.f32.partialorder %v262, 0.001
        %v264 = vsel %vm263, 1, 0
        %v265 = vcvt.s32.f32 %v264
        %v266 = vsel %vm263, %v262, 10000.0
        %v267 = vperm.slane %v266, 0
        %v268 = vsub.f32 %v195, %v267
        %v269 = vsub.f32 %v200, %v267
        %v270 = vmul.f32 %v268, %v268
        %v271 = vmul.f32 %v269, %v269
        %v272 = vld [vmem:[#allocation2] sm:$0xff]
        %v273 = vld [vmem:[#allocation2 + $0x8] sm:$0xff]
        %v274 = vmin.f32 %v272, %v270
        %v275 = vmin.f32 %v273, %v271
        %276 = vst [vmem:[#allocation2] sm:$0xff] %v274
        %277 = vst [vmem:[#allocation2 + $0x8] sm:$0xff] %v275
        %v278 = vmin.f32 %v270, %v271
        %v279 = vrot.slane %v278, 4
        %v280 = vmin.f32 %v278, %v279
        %v281 = vrot.slane %v280, 2
        %v282 = vmin.f32 %v280, %v281
        %v283 = vrot.slane %v282, 1
        %v284 = vmin.f32 %v282, %v283
        %v285 = vld [vmem:[#allocation3] sm:$0x1]
        %v286 = vmul.f32 %v284, %v265
        %v287 = vadd.f32 %v285, %v286
        %288 = vst [vmem:[#allocation3] sm:$0x1] %v287
        %v289 = vld [vmem:[#allocation4] sm:$0x1]
        %v290 = vadd.f32 %v289, %v265
        %291 = vst [vmem:[#allocation4] sm:$0x1] %v290
        %v292 = vld [vmem:[%s181 + $0x3] sm:$0x1]
        %vm293 = vcmp.ge.f32.partialorder %v292, 0.001
        %v294 = vsel %vm293, 1, 0
        %v295 = vcvt.s32.f32 %v294
        %v296 = vsel %vm293, %v292, 10000.0
        %v297 = vperm.slane %v296, 0
        %v298 = vsub.f32 %v195, %v297
        %v299 = vsub.f32 %v200, %v297
        %v300 = vmul.f32 %v298, %v298
        %v301 = vmul.f32 %v299, %v299
        %v302 = vld [vmem:[#allocation2] sm:$0xff]
        %v303 = vld [vmem:[#allocation2 + $0x8] sm:$0xff]
        %v304 = vmin.f32 %v302, %v300
        %v305 = vmin.f32 %v303, %v301
        %306 = vst [vmem:[#allocation2] sm:$0xff] %v304
        %307 = vst [vmem:[#allocation2 + $0x8] sm:$0xff] %v305
        %v308 = vmin.f32 %v300, %v301
        %v309 = vrot.slane %v308, 4
        %v310 = vmin.f32 %v308, %v309
        %v311 = vrot.slane %v310, 2
        %v312 = vmin.f32 %v310, %v311
        %v313 = vrot.slane %v312, 1
        %v314 = vmin.f32 %v312, %v313
        %v315 = vld [vmem:[#allocation3] sm:$0x1]
        %v316 = vmul.f32 %v314, %v295
        %v317 = vadd.f32 %v315, %v316
        %318 = vst [vmem:[#allocation3] sm:$0x1] %v317
        %v319 = vld [vmem:[#allocation4] sm:$0x1]
        %v320 = vadd.f32 %v319, %v295
        %321 = vst [vmem:[#allocation4] sm:$0x1] %v320
        %v322 = vld [vmem:[%s181 + $0x4] sm:$0x1]
        %vm323 = vcmp.ge.f32.partialorder %v322, 0.001
        %v324 = vsel %vm323, 1, 0
        %v325 = vcvt.s32.f32 %v324
        %v326 = vsel %vm323, %v322, 10000.0
        %v327 = vperm.slane %v326, 0
        %v328 = vsub.f32 %v195, %v327
        %v329 = vsub.f32 %v200, %v327
        %v330 = vmul.f32 %v328, %v328
        %v331 = vmul.f32 %v329, %v329
        %v332 = vld [vmem:[#allocation2] sm:$0xff]
        %v333 = vld [vmem:[#allocation2 + $0x8] sm:$0xff]
        %v334 = vmin.f32 %v332, %v330
        %v335 = vmin.f32 %v333, %v331
        %336 = vst [vmem:[#allocation2] sm:$0xff] %v334
        %337 = vst [vmem:[#allocation2 + $0x8] sm:$0xff] %v335
        %v338 = vmin.f32 %v330, %v331
        %v339 = vrot.slane %v338, 4
        %v340 = vmin.f32 %v338, %v339
        %v341 = vrot.slane %v340, 2
        %v342 = vmin.f32 %v340, %v341
        %v343 = vrot.slane %v342, 1
        %v344 = vmin.f32 %v342, %v343
        %v345 = vld [vmem:[#allocation3] sm:$0x1]
        %v346 = vmul.f32 %v344, %v325
        %v347 = vadd.f32 %v345, %v346
        %348 = vst [vmem:[#allocation3] sm:$0x1] %v347
        %v349 = vld [vmem:[#allocation4] sm:$0x1]
        %v350 = vadd.f32 %v349, %v325
        %351 = vst [vmem:[#allocation4] sm:$0x1] %v350
        %v352 = vld [vmem:[%s181 + $0x5] sm:$0x1]
        %vm353 = vcmp.ge.f32.partialorder %v352, 0.001
        %v354 = vsel %vm353, 1, 0
        %v355 = vcvt.s32.f32 %v354
        %v356 = vsel %vm353, %v352, 10000.0
        %v357 = vperm.slane %v356, 0
        %v358 = vsub.f32 %v195, %v357
        %v359 = vsub.f32 %v200, %v357
        %v360 = vmul.f32 %v358, %v358
        %v361 = vmul.f32 %v359, %v359
        %v362 = vld [vmem:[#allocation2] sm:$0xff]
        %v363 = vld [vmem:[#allocation2 + $0x8] sm:$0xff]
        %v364 = vmin.f32 %v362, %v360
        %v365 = vmin.f32 %v363, %v361
        %366 = vst [vmem:[#allocation2] sm:$0xff] %v364
        %367 = vst [vmem:[#allocation2 + $0x8] sm:$0xff] %v365
        %v368 = vmin.f32 %v360, %v361
        %v369 = vrot.slane %v368, 4
        %v370 = vmin.f32 %v368, %v369
        %v371 = vrot.slane %v370, 2
        %v372 = vmin.f32 %v370, %v371
        %v373 = vrot.slane %v372, 1
        %v374 = vmin.f32 %v372, %v373
        %v375 = vld [vmem:[#allocation3] sm:$0x1]
        %v376 = vmul.f32 %v374, %v355
        %v377 = vadd.f32 %v375, %v376
        %378 = vst [vmem:[#allocation3] sm:$0x1] %v377
        %v379 = vld [vmem:[#allocation4] sm:$0x1]
        %v380 = vadd.f32 %v379, %v355
        %381 = vst [vmem:[#allocation4] sm:$0x1] %v380
        %v382 = vld [vmem:[%s181 + $0x6] sm:$0x1]
        %vm383 = vcmp.ge.f32.partialorder %v382, 0.001
        %v384 = vsel %vm383, 1, 0
        %v385 = vcvt.s32.f32 %v384
        %v386 = vsel %vm383, %v382, 10000.0
        %v387 = vperm.slane %v386, 0
        %v388 = vsub.f32 %v195, %v387
        %v389 = vsub.f32 %v200, %v387
        %v390 = vmul.f32 %v388, %v388
        %v391 = vmul.f32 %v389, %v389
        %v392 = vld [vmem:[#allocation2] sm:$0xff]
        %v393 = vld [vmem:[#allocation2 + $0x8] sm:$0xff]
        %v394 = vmin.f32 %v392, %v390
        %v395 = vmin.f32 %v393, %v391
        %396 = vst [vmem:[#allocation2] sm:$0xff] %v394
        %397 = vst [vmem:[#allocation2 + $0x8] sm:$0xff] %v395
        %v398 = vmin.f32 %v390, %v391
        %v399 = vrot.slane %v398, 4
        %v400 = vmin.f32 %v398, %v399
        %v401 = vrot.slane %v400, 2
        %v402 = vmin.f32 %v400, %v401
        %v403 = vrot.slane %v402, 1
        %v404 = vmin.f32 %v402, %v403
        %v405 = vld [vmem:[#allocation3] sm:$0x1]
        %v406 = vmul.f32 %v404, %v385
        %v407 = vadd.f32 %v405, %v406
        %408 = vst [vmem:[#allocation3] sm:$0x1] %v407
        %v409 = vld [vmem:[#allocation4] sm:$0x1]
        %v410 = vadd.f32 %v409, %v385
        %411 = vst [vmem:[#allocation4] sm:$0x1] %v410
        %v412 = vld [vmem:[%s181 + $0x7] sm:$0x1]
        %vm413 = vcmp.ge.f32.partialorder %v412, 0.001
        %v414 = vsel %vm413, 1, 0
        %v415 = vcvt.s32.f32 %v414
        %v416 = vsel %vm413, %v412, 10000.0
        %v417 = vperm.slane %v416, 0
        %v418 = vsub.f32 %v195, %v417
        %v419 = vsub.f32 %v200, %v417
        %v420 = vmul.f32 %v418, %v418
        %v421 = vmul.f32 %v419, %v419
        %v422 = vld [vmem:[#allocation2] sm:$0xff]
        %v423 = vld [vmem:[#allocation2 + $0x8] sm:$0xff]
        %v424 = vmin.f32 %v422, %v420
        %v425 = vmin.f32 %v423, %v421
        %426 = vst [vmem:[#allocation2] sm:$0xff] %v424
        %427 = vst [vmem:[#allocation2 + $0x8] sm:$0xff] %v425
        %v428 = vmin.f32 %v420, %v421
        %v429 = vrot.slane %v428, 4
        %v430 = vmin.f32 %v428, %v429
        %v431 = vrot.slane %v430, 2
        %v432 = vmin.f32 %v430, %v431
        %v433 = vrot.slane %v432, 1
        %v434 = vmin.f32 %v432, %v433
        %v435 = vld [vmem:[#allocation3] sm:$0x1]
        %v436 = vmul.f32 %v434, %v415
        %v437 = vadd.f32 %v435, %v436
        %438 = vst [vmem:[#allocation3] sm:$0x1] %v437
        %v439 = vld [vmem:[#allocation4] sm:$0x1]
        %v440 = vadd.f32 %v439, %v415
        %441 = vst [vmem:[#allocation4] sm:$0x1] %v440
        // Predicated region
        $region33: #{tpu_custom_call.1} parent=27 // pred_check
          %p442 = pneg %p182
        $region34: #{tpu_custom_call.1} parent=27 // pred_check_branch
          %444 = sbr.rel (%p442) target = $region36
        $region35: #{tpu_custom_call.1} parent=27 // pred_region
          %v445 = vld [vmem:[#allocation2] sm:$0xff]
          %v446 = vld [vmem:[#allocation2 + $0x8] sm:$0xff]
          %447 = vmin.xlane.f32.xlu0 %v445
          %v448 = vpop.xlane.xlu0 %447
          %449 = vmin.xlane.f32.xlu0 %v446
          %v450 = vpop.xlane.xlu0 %449
          %v451 = vlaneseq
          %v452 = vshrl.u32 %v451, 7
          %v453 = vadd.s32 %v452, 8
          %vm454 = vcmp.lt.s32.totalorder %v452, 10
          %vm455 = vcmp.lt.s32.totalorder %v453, 10
          %v456 = vsel %vm454, %v448, 0.0
          %v457 = vsel %vm455, %v450, 0.0
          %vm458 = vcmask 7168
          %v459 = vsel %vm458, %v456, 0.0
          %v460 = vsel %vm458, %v457, 0.0
          %v461 = vadd.f32 %v459, %v460
          %462 = vadd.xlane.f32.xlu0 %v461
          %v463 = vpop.xlane.xlu0 %462
          %v464 = vrot.slane %v463, 4
          %v465 = vadd.f32 %v463, %v464
          %v466 = vrot.slane %v465, 2
          %v467 = vadd.f32 %v465, %v466
          %v468 = vrot.slane %v467, 1
          %v469 = vadd.f32 %v467, %v468
          %s470 = vtos %v469
          %s471 = smul.f32 %s470, 0.1
          %v472 = vld [vmem:[#allocation3] sm:$0x1]
          %vm473 = vcmask 1040384
          %v474 = vsel %vm473, %v472, 0.0
          %475 = vadd.xlane.f32.xlu0 %v474
          %v476 = vpop.xlane.xlu0 %475
          %v477 = vrot.slane %v476, 4
          %v478 = vadd.f32 %v476, %v477
          %v479 = vrot.slane %v478, 2
          %v480 = vadd.f32 %v478, %v479
          %v481 = vrot.slane %v480, 1
          %v482 = vadd.f32 %v480, %v481
          %s483 = vtos %v482
          %v484 = vld [vmem:[#allocation4] sm:$0x1]
          %v485 = vsel %vm473, %v484, 0.0
          %486 = vadd.xlane.f32.xlu0 %v485
          %v487 = vpop.xlane.xlu0 %486
          %v488 = vrot.slane %v487, 4
          %v489 = vadd.f32 %v487, %v488
          %v490 = vrot.slane %v489, 2
          %v491 = vadd.f32 %v489, %v490
          %v492 = vrot.slane %v491, 1
          %v493 = vadd.f32 %v491, %v492
          %s494 = vtos %v493
          %s495 = smax.f32 %s494, 1.0
          %v496 = vstv %s495
          %v497 = vrcp.pop %v496
          %v498 = vmul.f32 %v496, %v497
          %v499 = vsub.f32 1.0, %v498
          %v500 = vmul.f32 %v497, %v499
          %v501 = vadd.f32 %v497, %v500
          %vm502 = vweird.f32 %v496
          %vm503 = vweird.f32 %v497
          %vm504 = vmor %vm502, %vm503
          %v505 = vsel %vm504, %v497, %v501
          %v506 = vand.u32 2147483647, %v496
          %vm507 = vcmp.eq.f32.partialorder %v506, 8.507059e+37
          %v508 = vand.u32 %v496, 2147483648
          %v509 = vor.u32 1.1754944e-38, %v508
          %v510 = vsel %vm507, %v509, %v505
          %s511 = vtos %v510
          %s512 = smul.f32 %s483, %s511
          %p513 = scmp.gt.f32.partialorder %s494, 0.0
          %s514 = scalar_select %p513, %s471, 0.0
          %s515 = sadd.f32 %s514, %s512
          %v516 = vstv %s515
          %517 = vst [vmem:[%s169] sm:$0xff] %v516
        $region36: #{tpu_custom_call.1} parent=27 // pred_fallthru
          _
        %s518 = sand.u32 %s90, 1
        %s519 = scalar_lea.sflag [#allocation6], %s518
        %s520 = sand.u32 %s90, 1
        %s521 = smul.addr %s520, 8
        %s522 = scalar_lea.vmem [#allocation5], %s521
        // Predicated region
        $region37: #{tpu_custom_call.1} parent=27 // pred_check
          %p523 = pneg %p100
        $region38: #{tpu_custom_call.1} parent=27 // pred_check_branch
          %525 = sbr.rel (%p523) target = $region40
        $region39: #{tpu_custom_call.1} parent=27 // pred_region
          %527 = vsyncadd %s519, 0
          %s528 = smul.addr %s20, 8
          %s529 = scalar_lea.hbm %s2, %s528
          %s531 = sshll.u32 %s522, 4
          %s532 = int_to_ptr.vmem [resolvable:$true] %s531
          %s533 = sshll.u32 %s529, 4
          %s534 = int_to_ptr.hbm [resolvable:$true] %s533
          %536 = dma.vmem_to_hbm [thread:$0]  %s532, 128, %s534, %s519
        $region40: #{tpu_custom_call.1} parent=27 // pred_fallthru
          _
      $region28: #{tpu_custom_call.1} parent=5 // pred_fallthru
        _
      %p537 = scmp.le.s32.totalorder 2, %s11
      // Predicated region
      $region41: #{tpu_custom_call.1} parent=5 // pred_check
        %p538 = pneg %p537
      $region42: #{tpu_custom_call.1} parent=5 // pred_check_branch
        %540 = sbr.rel (%p538) target = $region44
      $region43: #{tpu_custom_call.1} parent=5 // pred_region
        %s541 = ssub.s32 %s11, 2
        // Predicated region
        $region45: #{tpu_custom_call.1} parent=43 // pred_check
          %p542 = pneg %p106
        $region46: #{tpu_custom_call.1} parent=43 // pred_check_branch
          %544 = sbr.rel (%p542) target = $region48
        $region47: #{tpu_custom_call.1} parent=43 // pred_region
          %s545 = sand.u32 %s91, 1
          %s546 = scalar_lea.sflag [#allocation6], %s545
          %s547 = sand.u32 %s91, 1
          %s548 = smul.addr %s547, 8
          %s549 = scalar_lea.vmem [#allocation5], %s548
          %551 = dma.done %s546, 128
        $region48: #{tpu_custom_call.1} parent=43 // pred_fallthru
          _
      $region44: #{tpu_custom_call.1} parent=5 // pred_fallthru
        _
    $region6: #{tpu_custom_call.1} parent=1 // loop_footer
      %s15 = sadd.s32 1, %s11
    $region7: #{tpu_custom_call.1} parent=1 // loop_footer_branch
      %10 = sbr.rel target = $region3
    $region8: #{tpu_custom_call.1} parent=1 // loop_exit
      _
    %552 = vsyncpa [#allocation6], 1
    %s553 = scalar_lea.sflag [#allocation6], 1
    %554 = vsyncpa %s553, 1

</llo_original>
